<compile_context>
chip_gen: v6e
topology: v6e:2x2x1
jax: 0.10.0
libtpu: 0.0.40
codegen_flags: <defaults>
</compile_context>

<pallas_src>
import functools

import jax
import jax.numpy as jnp
from jax.experimental import pallas as pl
from jax.experimental.pallas import tpu as pltpu


def _round_up(x, m):
    return (x + m - 1) // m * m


def _choose_tiling(M, block_rows):
    """Pick (TS, num_blocks): TS = sublane-chunks (of 128 cells) per block."""
    chunks = -(-M // 128)                                  # 128-cell lane chunks
    ts_cap = max(8, min(512, (block_rows // 128) // 8 * 8))
    if chunks <= 8:
        ts = 8                                             # minimum (8,128) tile
    else:
        # aim for >= 2 balanced blocks (v7x has 2 TensorCores), VMEM-capped
        ts = min(ts_cap, _round_up(-(-chunks // 2), 8))
    num_blocks = -(-chunks // ts)
    return ts, num_blocks


def yolo_loss_kernel(bm_ref, pred_ref, gt_ref, out_ref, *, S, B, C, TS,
                     M_total, L_coord, L_noobj):
    """One grid step over TS*128 grid cells.

    bm_ref:   SMEM (num_blocks,) int32   per-block (block_start % S^2)
    pred_ref: (C + 5B, TS, 128) f32      features outer, cells on (sublane, lane)
    gt_ref:   (1 + C + 4, TS, 128) f32
    out_ref:  (8, 128) f32               per-block lane-dense partial sums
    """
    Sf = float(S)
    S2f = float(S * S)
    inv_S = 1.0 / Sf

    pid = pl.program_id(0)
    base_mod = bm_ref[pid]                                   # block_start % S^2

    # ---- cell offsets from exact small-integer math -------------------------
    sub = jax.lax.broadcasted_iota(jnp.int32, (TS, 128), 0)
    lane = jax.lax.broadcasted_iota(jnp.int32, (TS, 128), 1)
    local = sub * 128 + lane                                 # row within block
    rowm = (local + base_mod).astype(jnp.float32)            # < S^2 + TS*128 (exact)
    q = jnp.floor(rowm / S2f)
    rem = rowm - q * S2f                                     # global row mod S^2
    cx = jnp.floor(rem / Sf)                                 # torch cell_x_offset (i)
    cy = rem - cx * Sf                                       # torch cell_y_offset (j)

    grow = pid * (TS * 128) + local                          # global row index
    valid = (grow < M_total).astype(jnp.float32)             # mask padded tail cells

    # ---- ground truth --------------------------------------------------------
    exists = gt_ref[0] * valid                               # (TS, 128)
    gt_x = gt_ref[1 + C + 0]
    gt_y = gt_ref[1 + C + 1]
    gt_w = gt_ref[1 + C + 2]
    gt_h = gt_ref[1 + C + 3]

    gxc = (gt_x + cx) * inv_S
    gyc = (gt_y + cy) * inv_S
    gxmin = gxc - gt_w * 0.5
    gymin = gyc - gt_h * 0.5
    gxmax = gxc + gt_w * 0.5
    gymax = gyc + gt_h * 0.5
    g_area = (gxmax - gxmin) * (gymax - gymin)

    # ---- per-box IoU ---------------------------------------------------------
    ious, confs, pxs, pys, pws, phs = [], [], [], [], [], []
    for b in range(B):
        off = C + 5 * b
        conf = pred_ref[off + 0]
        px = pred_ref[off + 1]
        py = pred_ref[off + 2]
        pw = pred_ref[off + 3]
        ph = pred_ref[off + 4]

        axc = (px + cx) * inv_S
        ayc = (py + cy) * inv_S
        aw = pw * pw
        ah = ph * ph
        pxmin = axc - aw * 0.5
        pymin = ayc - ah * 0.5
        pxmax = axc + aw * 0.5
        pymax = ayc + ah * 0.5
        p_area = (pxmax - pxmin) * (pymax - pymin)

        xi = jnp.maximum(gxmin, pxmin)
        yi = jnp.maximum(gymin, pymin)
        xa = jnp.minimum(gxmax, pxmax)
        ya = jnp.minimum(gymax, pymax)
        iw = jnp.maximum(xa - xi, 0.0)
        ih = jnp.maximum(ya - yi, 0.0)
        inter = iw * ih
        union = g_area + p_area - inter + 1e-6
        iou_b = inter / union            # exact divide: keeps argmax identical to ref

        ious.append(iou_b)
        confs.append(conf)
        pxs.append(px)
        pys.append(py)
        pws.append(pw)
        phs.append(ph)

    max_iou = ious[0]
    for b in range(1, B):
        max_iou = jnp.maximum(max_iou, ious[b])

    # one-hot of the FIRST maximal box (matches torch.max tie-breaking)
    found = jnp.zeros_like(max_iou)
    is_best = []
    for b in range(B):
        hit = jnp.where((ious[b] >= max_iou) & (found < 0.5), 1.0, 0.0)
        is_best.append(hit)
        found = found + hit

    gt_sw = jnp.sqrt(jnp.maximum(gt_w, 1e-6))
    gt_sh = jnp.sqrt(jnp.maximum(gt_h, 1e-6))

    loc_xy = jnp.zeros_like(exists)
    loc_wh = jnp.zeros_like(exists)
    obj = jnp.zeros_like(exists)
    noobj = jnp.zeros_like(exists)
    for b in range(B):
        eij = exists * is_best[b]
        loc_xy = loc_xy + eij * ((gt_x - pxs[b]) ** 2 + (gt_y - pys[b]) ** 2)
        loc_wh = loc_wh + eij * ((gt_sw - pws[b]) ** 2 + (gt_sh - phs[b]) ** 2)
        obj = obj + eij * (ious[b] - confs[b]) ** 2
        noobj = noobj + ((1.0 - exists) + exists * (1.0 - is_best[b])) * confs[b] ** 2

    cls = jnp.zeros_like(exists)
    for c in range(C):
        d = gt_ref[1 + c] - pred_ref[c]
        cls = cls + d * d
    cls = exists * cls

    per_cell = (L_coord * (loc_xy + loc_wh) + obj
                + L_noobj * (noobj * valid) + cls)           # (TS, 128)

    # Lane-dense partial sums: fold sublane groups -> (8, 128) tile per block.
    out_ref[...] = per_cell.reshape(TS // 8, 8, 128).sum(axis=0)


def yolo_loss_pallas(y_pred, y_gt, *, S, B, C, L_coord=5.0, L_noobj=0.5,
                     block_rows=8192):
    """y_pred: (N, S, S, C + 5B), y_gt: (N, S, S, 1 + C + 4). Returns scalar."""
    N = y_pred.shape[0]
    M = N * S * S
    Fp = C + 5 * B
    Fg = 1 + C + 4

    TS, num_blocks = _choose_tiling(M, block_rows)
    chunks_pad = num_blocks * TS
    M_pad = chunks_pad * 128

    # Channel-first slabs with cells spread over (sublane-chunk, lane) axes.
    # TODO(synk): the (M, F) -> (F, M) transpose is one extra HBM pass; have the
    # producer emit channel-first activations (or bf16) to remove it entirely.
    pred_t = y_pred.reshape(M, Fp).astype(jnp.float32).T       # (Fp, M)
    gt_t = y_gt.reshape(M, Fg).astype(jnp.float32).T           # (Fg, M)
    pad = M_pad - M
    if pad:
        pred_t = jnp.pad(pred_t, ((0, 0), (0, pad)))           # zero-pad tail
        gt_t = jnp.pad(gt_t, ((0, 0), (0, pad)))
    pred3 = pred_t.reshape(Fp, chunks_pad, 128)                # metadata-only
    gt3 = gt_t.reshape(Fg, chunks_pad, 128)

    # Per-block (block_start % S^2) lookup table -> scalar-prefetched to SMEM.
    base_mod = (jnp.arange(num_blocks, dtype=jnp.int32) * (TS * 128)) % (S * S)
    base_mod = base_mod.astype(jnp.int32)

    kernel = functools.partial(
        yolo_loss_kernel, S=S, B=B, C=C, TS=TS, M_total=M,
        L_coord=float(L_coord), L_noobj=float(L_noobj))

    partials = pl.pallas_call(
        kernel,
        out_shape=jax.ShapeDtypeStruct((num_blocks * 8, 128), jnp.float32),
        grid_spec=pltpu.PrefetchScalarGridSpec(
            num_scalar_prefetch=1,
            grid=(num_blocks,),
            in_specs=[
                pl.BlockSpec((Fp, TS, 128), lambda i, bm: (0, i, 0)),
                pl.BlockSpec((Fg, TS, 128), lambda i, bm: (0, i, 0)),
            ],
            out_specs=pl.BlockSpec((8, 128), lambda i, bm: (i, 0)),
        ),
        compiler_params=pltpu.CompilerParams(
            dimension_semantics=("parallel",)),
    )(base_mod, pred3, gt3)

    # dense final reduction over lane-dense per-block tiles
    return jnp.sum(partials) / float(N)


def yolo_loss_ref(y_pred, y_gt, *, S, B, C, L_coord=5.0, L_noobj=0.5):
    """Pure-JAX reference mirroring the PyTorch module (for verification)."""
    N = y_pred.shape[0]
    y_pred = y_pred.astype(jnp.float32)
    y_gt = y_gt.astype(jnp.float32)

    exists = y_gt[..., 0:1]                         # (N,S,S,1)
    gt_class = y_gt[..., 1:1 + C]                   # (N,S,S,C)
    gt_box = y_gt[..., None, 1 + C:]                # (N,S,S,1,4)
    pred_class = y_pred[..., :C]
    conf = jnp.stack([y_pred[..., C + 5 * b] for b in range(B)], axis=-1)
    coords = jnp.stack(
        [y_pred[..., C + 5 * b + 1:C + 5 * b + 5] for b in range(B)], axis=-2)

    ar = jnp.arange(S, dtype=jnp.float32)
    cx = jnp.broadcast_to(ar[None, :, None, None], (N, S, S, 1))
    cy = jnp.broadcast_to(ar[None, None, :, None], (N, S, S, 1))

    gx = (gt_box[..., 0] + cx) / S
    gy = (gt_box[..., 1] + cy) / S
    gw = gt_box[..., 2]
    gh = gt_box[..., 3]
    px = (coords[..., 0] + cx) / S
    py = (coords[..., 1] + cy) / S
    pw = coords[..., 2] ** 2
    ph = coords[..., 3] ** 2

    gxmin, gymin, gxmax, gymax = gx - gw / 2, gy - gh / 2, gx + gw / 2, gy + gh / 2
    pxmin, pymin, pxmax, pymax = px - pw / 2, py - ph / 2, px + pw / 2, py + ph / 2

    xi = jnp.maximum(gxmin, pxmin)
    yi = jnp.maximum(gymin, pymin)
    xa = jnp.minimum(gxmax, pxmax)
    ya = jnp.minimum(gymax, pymax)
    a1 = (gxmax - gxmin) * (gymax - gymin)
    a2 = (pxmax - pxmin) * (pymax - pymin)
    inter = jnp.maximum(xa - xi, 0.0) * jnp.maximum(ya - yi, 0.0)
    iou_sc = inter / (a1 + a2 - inter + 1e-6)       # (N,S,S,B)

    is_best = jax.nn.one_hot(jnp.argmax(iou_sc, axis=-1), B, dtype=jnp.float32)
    eij = exists * is_best

    loc_xy = jnp.sum(eij[..., None] * (gt_box[..., :2] - coords[..., :2]) ** 2)
    gt_sqrt = jnp.sqrt(jnp.maximum(gt_box[..., 2:4], 1e-6))
    loc_wh = jnp.sum(eij[..., None] * (gt_sqrt - coords[..., 2:4]) ** 2)
    obj = jnp.sum(eij * (iou_sc - conf) ** 2)
    noobj = L_noobj * jnp.sum(((1 - exists) + exists * (1 - is_best)) * conf ** 2)
    cls = jnp.sum(exists * jnp.sum((gt_class - pred_class) ** 2, axis=-1, keepdims=True))
    return (L_coord * (loc_xy + loc_wh) + obj + noobj + cls) / N


def _make_inputs(key, N, S, B, C):
    kp, ke, kc, kb = jax.random.split(key, 4)
    y_pred = jax.random.normal(kp, (N, S, S, C + 5 * B), dtype=jnp.float32) * 0.5
    exists = (jax.random.uniform(ke, (N, S, S, 1)) < 0.3).astype(jnp.float32)
    cls_oh = jax.nn.one_hot(
        jax.random.randint(kc, (N, S, S), 0, C), C, dtype=jnp.float32)
    boxes = jax.random.uniform(kb, (N, S, S, 4), minval=0.05, maxval=0.95)
    y_gt = jnp.concatenate([exists, cls_oh, boxes], axis=-1)
    return y_pred, y_gt


if __name__ == "__main__":
    S, B, C = 7, 2, 4
    key = jax.random.PRNGKey(0)
    k1, k2 = jax.random.split(key)

    # test 1: tiny batch -> single block (M = 98 padded to one (8,128) tile set)
    y_pred, y_gt = _make_inputs(k1, 2, S, B, C)
    loss = jax.block_until_ready(yolo_loss_pallas(y_pred, y_gt, S=S, B=B, C=C))
    ref = yolo_loss_ref(y_pred, y_gt, S=S, B=B, C=C)
    assert jnp.allclose(loss, ref, rtol=1e-4, atol=1e-4), (loss, ref)

    # test 2: larger batch -> 2 grid blocks (exercises per-block cell offsets,
    # padded tail masking, and the parallel grid axis)
    y_pred2, y_gt2 = _make_inputs(k2, 24, S, B, C)
    loss2 = jax.block_until_ready(yolo_loss_pallas(y_pred2, y_gt2, S=S, B=B, C=C))
    ref2 = yolo_loss_ref(y_pred2, y_gt2, S=S, B=B, C=C)
    assert jnp.allclose(loss2, ref2, rtol=1e-4, atol=1e-4), (loss2, ref2)

    print("KERNEL_OK")
</pallas_src>

<mosaic_0001>
module attributes {stable_mosaic.version = 11 : i64} {
  func.func @yolo_loss_kernel(%arg0: i32, %arg1: memref<1xi32, #tpu.memory_space<smem>>, %arg2: memref<14x8x128xf32, #tpu.memory_space<vmem>>, %arg3: memref<9x8x128xf32, #tpu.memory_space<vmem>>, %arg4: memref<8x128xf32, #tpu.memory_space<vmem>>) attributes {dimension_semantics = [#tpu.dimension_semantics<parallel>], iteration_bounds = array<i64: 1>, scalar_prefetch = 1 : i64, scratch_operands = 0 : i64, tpu.core_type = #tpu.core_type<tc>, window_params = [{transform_indices = @transform_0, window_bounds = array<i64: 14, 8, 128>}, {transform_indices = @transform_1, window_bounds = array<i64: 9, 8, 128>}, {transform_indices = @transform_2, window_bounds = array<i64: 8, 128>}]} {
    %0 = arith.index_cast %arg0 : i32 to index
    %1 = memref.load %arg1[%0] : memref<1xi32, #tpu.memory_space<smem>>
    %2 = tpu.iota {dimensions = array<i32: 0>} : vector<8x128xi32>
    %3 = tpu.iota {dimensions = array<i32: 1>} : vector<8x128xi32>
    %c128_i32 = arith.constant 128 : i32
    %4 = vector.broadcast %c128_i32 : i32 to vector<8x128xi32>
    %5 = arith.muli %2, %4 : vector<8x128xi32>
    %6 = arith.addi %5, %3 : vector<8x128xi32>
    %7 = vector.broadcast %1 : i32 to vector<8x128xi32>
    %8 = arith.addi %6, %7 : vector<8x128xi32>
    %9 = arith.sitofp %8 : vector<8x128xi32> to vector<8x128xf32>
    %cst = arith.constant 4.900000e+01 : f32
    %10 = vector.broadcast %cst : f32 to vector<8x128xf32>
    %11 = arith.divf %9, %10 : vector<8x128xf32>
    %12 = math.floor %11 : vector<8x128xf32>
    %cst_0 = arith.constant 4.900000e+01 : f32
    %13 = vector.broadcast %cst_0 : f32 to vector<8x128xf32>
    %14 = arith.mulf %12, %13 : vector<8x128xf32>
    %15 = arith.subf %9, %14 : vector<8x128xf32>
    %cst_1 = arith.constant 7.000000e+00 : f32
    %16 = vector.broadcast %cst_1 : f32 to vector<8x128xf32>
    %17 = arith.divf %15, %16 : vector<8x128xf32>
    %18 = math.floor %17 : vector<8x128xf32>
    %cst_2 = arith.constant 7.000000e+00 : f32
    %19 = vector.broadcast %cst_2 : f32 to vector<8x128xf32>
    %20 = arith.mulf %18, %19 : vector<8x128xf32>
    %21 = arith.subf %15, %20 : vector<8x128xf32>
    %c1024_i32 = arith.constant 1024 : i32
    %22 = arith.muli %arg0, %c1024_i32 : i32
    %23 = vector.broadcast %22 : i32 to vector<8x128xi32>
    %24 = arith.addi %23, %6 : vector<8x128xi32>
    %c98_i32 = arith.constant 98 : i32
    %25 = vector.broadcast %c98_i32 : i32 to vector<8x128xi32>
    %26 = arith.cmpi slt, %24, %25 : vector<8x128xi32>
    %27 = arith.extui %26 : vector<8x128xi1> to vector<8x128xi32>
    %28 = arith.sitofp %27 : vector<8x128xi32> to vector<8x128xf32>
    %c0 = arith.constant 0 : index
    %c0_3 = arith.constant 0 : index
    %c0_4 = arith.constant 0 : index
    %29 = vector.load %arg3[%c0, %c0_3, %c0_4] : memref<9x8x128xf32, #tpu.memory_space<vmem>>, vector<1x8x128xf32>
    %30 = vector.shape_cast %29 : vector<1x8x128xf32> to vector<8x128xf32>
    %31 = arith.mulf %30, %28 : vector<8x128xf32>
    %c5 = arith.constant 5 : index
    %c0_5 = arith.constant 0 : index
    %c0_6 = arith.constant 0 : index
    %32 = vector.load %arg3[%c5, %c0_5, %c0_6] : memref<9x8x128xf32, #tpu.memory_space<vmem>>, vector<1x8x128xf32>
    %33 = vector.shape_cast %32 : vector<1x8x128xf32> to vector<8x128xf32>
    %c6 = arith.constant 6 : index
    %c0_7 = arith.constant 0 : index
    %c0_8 = arith.constant 0 : index
    %34 = vector.load %arg3[%c6, %c0_7, %c0_8] : memref<9x8x128xf32, #tpu.memory_space<vmem>>, vector<1x8x128xf32>
    %35 = vector.shape_cast %34 : vector<1x8x128xf32> to vector<8x128xf32>
    %c7 = arith.constant 7 : index
    %c0_9 = arith.constant 0 : index
    %c0_10 = arith.constant 0 : index
    %36 = vector.load %arg3[%c7, %c0_9, %c0_10] : memref<9x8x128xf32, #tpu.memory_space<vmem>>, vector<1x8x128xf32>
    %37 = vector.shape_cast %36 : vector<1x8x128xf32> to vector<8x128xf32>
    %c8 = arith.constant 8 : index
    %c0_11 = arith.constant 0 : index
    %c0_12 = arith.constant 0 : index
    %38 = vector.load %arg3[%c8, %c0_11, %c0_12] : memref<9x8x128xf32, #tpu.memory_space<vmem>>, vector<1x8x128xf32>
    %39 = vector.shape_cast %38 : vector<1x8x128xf32> to vector<8x128xf32>
    %40 = arith.addf %33, %18 : vector<8x128xf32>
    %cst_13 = arith.constant 0.142857149 : f32
    %41 = vector.broadcast %cst_13 : f32 to vector<8x128xf32>
    %42 = arith.mulf %40, %41 : vector<8x128xf32>
    %43 = arith.addf %35, %21 : vector<8x128xf32>
    %cst_14 = arith.constant 0.142857149 : f32
    %44 = vector.broadcast %cst_14 : f32 to vector<8x128xf32>
    %45 = arith.mulf %43, %44 : vector<8x128xf32>
    %cst_15 = arith.constant 5.000000e-01 : f32
    %46 = vector.broadcast %cst_15 : f32 to vector<8x128xf32>
    %47 = arith.mulf %37, %46 : vector<8x128xf32>
    %48 = arith.subf %42, %47 : vector<8x128xf32>
    %cst_16 = arith.constant 5.000000e-01 : f32
    %49 = vector.broadcast %cst_16 : f32 to vector<8x128xf32>
    %50 = arith.mulf %39, %49 : vector<8x128xf32>
    %51 = arith.subf %45, %50 : vector<8x128xf32>
    %cst_17 = arith.constant 5.000000e-01 : f32
    %52 = vector.broadcast %cst_17 : f32 to vector<8x128xf32>
    %53 = arith.mulf %37, %52 : vector<8x128xf32>
    %54 = arith.addf %42, %53 : vector<8x128xf32>
    %cst_18 = arith.constant 5.000000e-01 : f32
    %55 = vector.broadcast %cst_18 : f32 to vector<8x128xf32>
    %56 = arith.mulf %39, %55 : vector<8x128xf32>
    %57 = arith.addf %45, %56 : vector<8x128xf32>
    %58 = arith.subf %54, %48 : vector<8x128xf32>
    %59 = arith.subf %57, %51 : vector<8x128xf32>
    %60 = arith.mulf %58, %59 : vector<8x128xf32>
    %c4 = arith.constant 4 : index
    %c0_19 = arith.constant 0 : index
    %c0_20 = arith.constant 0 : index
    %61 = vector.load %arg2[%c4, %c0_19, %c0_20] : memref<14x8x128xf32, #tpu.memory_space<vmem>>, vector<1x8x128xf32>
    %62 = vector.shape_cast %61 : vector<1x8x128xf32> to vector<8x128xf32>
    %c5_21 = arith.constant 5 : index
    %c0_22 = arith.constant 0 : index
    %c0_23 = arith.constant 0 : index
    %63 = vector.load %arg2[%c5_21, %c0_22, %c0_23] : memref<14x8x128xf32, #tpu.memory_space<vmem>>, vector<1x8x128xf32>
    %64 = vector.shape_cast %63 : vector<1x8x128xf32> to vector<8x128xf32>
    %c6_24 = arith.constant 6 : index
    %c0_25 = arith.constant 0 : index
    %c0_26 = arith.constant 0 : index
    %65 = vector.load %arg2[%c6_24, %c0_25, %c0_26] : memref<14x8x128xf32, #tpu.memory_space<vmem>>, vector<1x8x128xf32>
    %66 = vector.shape_cast %65 : vector<1x8x128xf32> to vector<8x128xf32>
    %c7_27 = arith.constant 7 : index
    %c0_28 = arith.constant 0 : index
    %c0_29 = arith.constant 0 : index
    %67 = vector.load %arg2[%c7_27, %c0_28, %c0_29] : memref<14x8x128xf32, #tpu.memory_space<vmem>>, vector<1x8x128xf32>
    %68 = vector.shape_cast %67 : vector<1x8x128xf32> to vector<8x128xf32>
    %c8_30 = arith.constant 8 : index
    %c0_31 = arith.constant 0 : index
    %c0_32 = arith.constant 0 : index
    %69 = vector.load %arg2[%c8_30, %c0_31, %c0_32] : memref<14x8x128xf32, #tpu.memory_space<vmem>>, vector<1x8x128xf32>
    %70 = vector.shape_cast %69 : vector<1x8x128xf32> to vector<8x128xf32>
    %71 = arith.addf %64, %18 : vector<8x128xf32>
    %cst_33 = arith.constant 0.142857149 : f32
    %72 = vector.broadcast %cst_33 : f32 to vector<8x128xf32>
    %73 = arith.mulf %71, %72 : vector<8x128xf32>
    %74 = arith.addf %66, %21 : vector<8x128xf32>
    %cst_34 = arith.constant 0.142857149 : f32
    %75 = vector.broadcast %cst_34 : f32 to vector<8x128xf32>
    %76 = arith.mulf %74, %75 : vector<8x128xf32>
    %77 = arith.mulf %68, %68 : vector<8x128xf32>
    %78 = arith.mulf %70, %70 : vector<8x128xf32>
    %cst_35 = arith.constant 5.000000e-01 : f32
    %79 = vector.broadcast %cst_35 : f32 to vector<8x128xf32>
    %80 = arith.mulf %77, %79 : vector<8x128xf32>
    %81 = arith.subf %73, %80 : vector<8x128xf32>
    %cst_36 = arith.constant 5.000000e-01 : f32
    %82 = vector.broadcast %cst_36 : f32 to vector<8x128xf32>
    %83 = arith.mulf %78, %82 : vector<8x128xf32>
    %84 = arith.subf %76, %83 : vector<8x128xf32>
    %cst_37 = arith.constant 5.000000e-01 : f32
    %85 = vector.broadcast %cst_37 : f32 to vector<8x128xf32>
    %86 = arith.mulf %77, %85 : vector<8x128xf32>
    %87 = arith.addf %73, %86 : vector<8x128xf32>
    %cst_38 = arith.constant 5.000000e-01 : f32
    %88 = vector.broadcast %cst_38 : f32 to vector<8x128xf32>
    %89 = arith.mulf %78, %88 : vector<8x128xf32>
    %90 = arith.addf %76, %89 : vector<8x128xf32>
    %91 = arith.subf %87, %81 : vector<8x128xf32>
    %92 = arith.subf %90, %84 : vector<8x128xf32>
    %93 = arith.mulf %91, %92 : vector<8x128xf32>
    %94 = arith.maximumf %48, %81 : vector<8x128xf32>
    %95 = arith.maximumf %51, %84 : vector<8x128xf32>
    %96 = arith.minimumf %54, %87 : vector<8x128xf32>
    %97 = arith.minimumf %57, %90 : vector<8x128xf32>
    %98 = arith.subf %96, %94 : vector<8x128xf32>
    %cst_39 = arith.constant 0.000000e+00 : f32
    %99 = vector.broadcast %cst_39 : f32 to vector<8x128xf32>
    %100 = arith.maximumf %98, %99 : vector<8x128xf32>
    %101 = arith.subf %97, %95 : vector<8x128xf32>
    %cst_40 = arith.constant 0.000000e+00 : f32
    %102 = vector.broadcast %cst_40 : f32 to vector<8x128xf32>
    %103 = arith.maximumf %101, %102 : vector<8x128xf32>
    %104 = arith.mulf %100, %103 : vector<8x128xf32>
    %105 = arith.addf %60, %93 : vector<8x128xf32>
    %106 = arith.subf %105, %104 : vector<8x128xf32>
    %cst_41 = arith.constant 9.99999997E-7 : f32
    %107 = vector.broadcast %cst_41 : f32 to vector<8x128xf32>
    %108 = arith.addf %106, %107 : vector<8x128xf32>
    %109 = arith.divf %104, %108 : vector<8x128xf32>
    %c9 = arith.constant 9 : index
    %c0_42 = arith.constant 0 : index
    %c0_43 = arith.constant 0 : index
    %110 = vector.load %arg2[%c9, %c0_42, %c0_43] : memref<14x8x128xf32, #tpu.memory_space<vmem>>, vector<1x8x128xf32>
    %111 = vector.shape_cast %110 : vector<1x8x128xf32> to vector<8x128xf32>
    %c10 = arith.constant 10 : index
    %c0_44 = arith.constant 0 : index
    %c0_45 = arith.constant 0 : index
    %112 = vector.load %arg2[%c10, %c0_44, %c0_45] : memref<14x8x128xf32, #tpu.memory_space<vmem>>, vector<1x8x128xf32>
    %113 = vector.shape_cast %112 : vector<1x8x128xf32> to vector<8x128xf32>
    %c11 = arith.constant 11 : index
    %c0_46 = arith.constant 0 : index
    %c0_47 = arith.constant 0 : index
    %114 = vector.load %arg2[%c11, %c0_46, %c0_47] : memref<14x8x128xf32, #tpu.memory_space<vmem>>, vector<1x8x128xf32>
    %115 = vector.shape_cast %114 : vector<1x8x128xf32> to vector<8x128xf32>
    %c12 = arith.constant 12 : index
    %c0_48 = arith.constant 0 : index
    %c0_49 = arith.constant 0 : index
    %116 = vector.load %arg2[%c12, %c0_48, %c0_49] : memref<14x8x128xf32, #tpu.memory_space<vmem>>, vector<1x8x128xf32>
    %117 = vector.shape_cast %116 : vector<1x8x128xf32> to vector<8x128xf32>
    %c13 = arith.constant 13 : index
    %c0_50 = arith.constant 0 : index
    %c0_51 = arith.constant 0 : index
    %118 = vector.load %arg2[%c13, %c0_50, %c0_51] : memref<14x8x128xf32, #tpu.memory_space<vmem>>, vector<1x8x128xf32>
    %119 = vector.shape_cast %118 : vector<1x8x128xf32> to vector<8x128xf32>
    %120 = arith.addf %113, %18 : vector<8x128xf32>
    %cst_52 = arith.constant 0.142857149 : f32
    %121 = vector.broadcast %cst_52 : f32 to vector<8x128xf32>
    %122 = arith.mulf %120, %121 : vector<8x128xf32>
    %123 = arith.addf %115, %21 : vector<8x128xf32>
    %cst_53 = arith.constant 0.142857149 : f32
    %124 = vector.broadcast %cst_53 : f32 to vector<8x128xf32>
    %125 = arith.mulf %123, %124 : vector<8x128xf32>
    %126 = arith.mulf %117, %117 : vector<8x128xf32>
    %127 = arith.mulf %119, %119 : vector<8x128xf32>
    %cst_54 = arith.constant 5.000000e-01 : f32
    %128 = vector.broadcast %cst_54 : f32 to vector<8x128xf32>
    %129 = arith.mulf %126, %128 : vector<8x128xf32>
    %130 = arith.subf %122, %129 : vector<8x128xf32>
    %cst_55 = arith.constant 5.000000e-01 : f32
    %131 = vector.broadcast %cst_55 : f32 to vector<8x128xf32>
    %132 = arith.mulf %127, %131 : vector<8x128xf32>
    %133 = arith.subf %125, %132 : vector<8x128xf32>
    %cst_56 = arith.constant 5.000000e-01 : f32
    %134 = vector.broadcast %cst_56 : f32 to vector<8x128xf32>
    %135 = arith.mulf %126, %134 : vector<8x128xf32>
    %136 = arith.addf %122, %135 : vector<8x128xf32>
    %cst_57 = arith.constant 5.000000e-01 : f32
    %137 = vector.broadcast %cst_57 : f32 to vector<8x128xf32>
    %138 = arith.mulf %127, %137 : vector<8x128xf32>
    %139 = arith.addf %125, %138 : vector<8x128xf32>
    %140 = arith.subf %136, %130 : vector<8x128xf32>
    %141 = arith.subf %139, %133 : vector<8x128xf32>
    %142 = arith.mulf %140, %141 : vector<8x128xf32>
    %143 = arith.maximumf %48, %130 : vector<8x128xf32>
    %144 = arith.maximumf %51, %133 : vector<8x128xf32>
    %145 = arith.minimumf %54, %136 : vector<8x128xf32>
    %146 = arith.minimumf %57, %139 : vector<8x128xf32>
    %147 = arith.subf %145, %143 : vector<8x128xf32>
    %cst_58 = arith.constant 0.000000e+00 : f32
    %148 = vector.broadcast %cst_58 : f32 to vector<8x128xf32>
    %149 = arith.maximumf %147, %148 : vector<8x128xf32>
    %150 = arith.subf %146, %144 : vector<8x128xf32>
    %cst_59 = arith.constant 0.000000e+00 : f32
    %151 = vector.broadcast %cst_59 : f32 to vector<8x128xf32>
    %152 = arith.maximumf %150, %151 : vector<8x128xf32>
    %153 = arith.mulf %149, %152 : vector<8x128xf32>
    %154 = arith.addf %60, %142 : vector<8x128xf32>
    %155 = arith.subf %154, %153 : vector<8x128xf32>
    %cst_60 = arith.constant 9.99999997E-7 : f32
    %156 = vector.broadcast %cst_60 : f32 to vector<8x128xf32>
    %157 = arith.addf %155, %156 : vector<8x128xf32>
    %158 = arith.divf %153, %157 : vector<8x128xf32>
    %159 = arith.maximumf %109, %158 : vector<8x128xf32>
    %cst_61 = arith.constant 0.000000e+00 : f32
    %160 = vector.broadcast %cst_61 : f32 to vector<8x128xf32>
    %161 = arith.cmpf oge, %109, %159 : vector<8x128xf32>
    %cst_62 = arith.constant 5.000000e-01 : f32
    %162 = vector.broadcast %cst_62 : f32 to vector<8x128xf32>
    %163 = arith.cmpf olt, %160, %162 : vector<8x128xf32>
    %164 = arith.andi %161, %163 : vector<8x128xi1>
    %cst_63 = arith.constant 1.000000e+00 : f32
    %cst_64 = arith.constant 0.000000e+00 : f32
    %165 = vector.broadcast %cst_63 : f32 to vector<8x128xf32>
    %166 = vector.broadcast %cst_64 : f32 to vector<8x128xf32>
    %167 = arith.select %164, %165, %166 : vector<8x128xi1>, vector<8x128xf32>
    %168 = arith.addf %160, %167 : vector<8x128xf32>
    %169 = arith.cmpf oge, %158, %159 : vector<8x128xf32>
    %cst_65 = arith.constant 5.000000e-01 : f32
    %170 = vector.broadcast %cst_65 : f32 to vector<8x128xf32>
    %171 = arith.cmpf olt, %168, %170 : vector<8x128xf32>
    %172 = arith.andi %169, %171 : vector<8x128xi1>
    %cst_66 = arith.constant 1.000000e+00 : f32
    %cst_67 = arith.constant 0.000000e+00 : f32
    %173 = vector.broadcast %cst_66 : f32 to vector<8x128xf32>
    %174 = vector.broadcast %cst_67 : f32 to vector<8x128xf32>
    %175 = arith.select %172, %173, %174 : vector<8x128xi1>, vector<8x128xf32>
    %cst_68 = arith.constant 9.99999997E-7 : f32
    %176 = vector.broadcast %cst_68 : f32 to vector<8x128xf32>
    %177 = arith.maximumf %37, %176 : vector<8x128xf32>
    %178 = math.sqrt %177 : vector<8x128xf32>
    %cst_69 = arith.constant 9.99999997E-7 : f32
    %179 = vector.broadcast %cst_69 : f32 to vector<8x128xf32>
    %180 = arith.maximumf %39, %179 : vector<8x128xf32>
    %181 = math.sqrt %180 : vector<8x128xf32>
    %cst_70 = arith.constant 0.000000e+00 : f32
    %182 = vector.broadcast %cst_70 : f32 to vector<8x128xf32>
    %cst_71 = arith.constant 0.000000e+00 : f32
    %183 = vector.broadcast %cst_71 : f32 to vector<8x128xf32>
    %cst_72 = arith.constant 0.000000e+00 : f32
    %184 = vector.broadcast %cst_72 : f32 to vector<8x128xf32>
    %cst_73 = arith.constant 0.000000e+00 : f32
    %185 = vector.broadcast %cst_73 : f32 to vector<8x128xf32>
    %186 = arith.mulf %31, %167 : vector<8x128xf32>
    %187 = arith.subf %33, %64 : vector<8x128xf32>
    %188 = arith.mulf %187, %187 : vector<8x128xf32>
    %189 = arith.subf %35, %66 : vector<8x128xf32>
    %190 = arith.mulf %189, %189 : vector<8x128xf32>
    %191 = arith.addf %188, %190 : vector<8x128xf32>
    %192 = arith.mulf %186, %191 : vector<8x128xf32>
    %193 = arith.addf %182, %192 : vector<8x128xf32>
    %194 = arith.subf %178, %68 : vector<8x128xf32>
    %195 = arith.mulf %194, %194 : vector<8x128xf32>
    %196 = arith.subf %181, %70 : vector<8x128xf32>
    %197 = arith.mulf %196, %196 : vector<8x128xf32>
    %198 = arith.addf %195, %197 : vector<8x128xf32>
    %199 = arith.mulf %186, %198 : vector<8x128xf32>
    %200 = arith.addf %183, %199 : vector<8x128xf32>
    %201 = arith.subf %109, %62 : vector<8x128xf32>
    %202 = arith.mulf %201, %201 : vector<8x128xf32>
    %203 = arith.mulf %186, %202 : vector<8x128xf32>
    %204 = arith.addf %184, %203 : vector<8x128xf32>
    %cst_74 = arith.constant 1.000000e+00 : f32
    %205 = vector.broadcast %cst_74 : f32 to vector<8x128xf32>
    %206 = arith.subf %205, %31 : vector<8x128xf32>
    %cst_75 = arith.constant 1.000000e+00 : f32
    %207 = vector.broadcast %cst_75 : f32 to vector<8x128xf32>
    %208 = arith.subf %207, %167 : vector<8x128xf32>
    %209 = arith.mulf %31, %208 : vector<8x128xf32>
    %210 = arith.addf %206, %209 : vector<8x128xf32>
    %211 = arith.mulf %62, %62 : vector<8x128xf32>
    %212 = arith.mulf %210, %211 : vector<8x128xf32>
    %213 = arith.addf %185, %212 : vector<8x128xf32>
    %214 = arith.mulf %31, %175 : vector<8x128xf32>
    %215 = arith.subf %33, %113 : vector<8x128xf32>
    %216 = arith.mulf %215, %215 : vector<8x128xf32>
    %217 = arith.subf %35, %115 : vector<8x128xf32>
    %218 = arith.mulf %217, %217 : vector<8x128xf32>
    %219 = arith.addf %216, %218 : vector<8x128xf32>
    %220 = arith.mulf %214, %219 : vector<8x128xf32>
    %221 = arith.addf %193, %220 : vector<8x128xf32>
    %222 = arith.subf %178, %117 : vector<8x128xf32>
    %223 = arith.mulf %222, %222 : vector<8x128xf32>
    %224 = arith.subf %181, %119 : vector<8x128xf32>
    %225 = arith.mulf %224, %224 : vector<8x128xf32>
    %226 = arith.addf %223, %225 : vector<8x128xf32>
    %227 = arith.mulf %214, %226 : vector<8x128xf32>
    %228 = arith.addf %200, %227 : vector<8x128xf32>
    %229 = arith.subf %158, %111 : vector<8x128xf32>
    %230 = arith.mulf %229, %229 : vector<8x128xf32>
    %231 = arith.mulf %214, %230 : vector<8x128xf32>
    %232 = arith.addf %204, %231 : vector<8x128xf32>
    %cst_76 = arith.constant 1.000000e+00 : f32
    %233 = vector.broadcast %cst_76 : f32 to vector<8x128xf32>
    %234 = arith.subf %233, %31 : vector<8x128xf32>
    %cst_77 = arith.constant 1.000000e+00 : f32
    %235 = vector.broadcast %cst_77 : f32 to vector<8x128xf32>
    %236 = arith.subf %235, %175 : vector<8x128xf32>
    %237 = arith.mulf %31, %236 : vector<8x128xf32>
    %238 = arith.addf %234, %237 : vector<8x128xf32>
    %239 = arith.mulf %111, %111 : vector<8x128xf32>
    %240 = arith.mulf %238, %239 : vector<8x128xf32>
    %241 = arith.addf %213, %240 : vector<8x128xf32>
    %cst_78 = arith.constant 0.000000e+00 : f32
    %242 = vector.broadcast %cst_78 : f32 to vector<8x128xf32>
    %c1 = arith.constant 1 : index
    %c0_79 = arith.constant 0 : index
    %c0_80 = arith.constant 0 : index
    %243 = vector.load %arg3[%c1, %c0_79, %c0_80] : memref<9x8x128xf32, #tpu.memory_space<vmem>>, vector<1x8x128xf32>
    %244 = vector.shape_cast %243 : vector<1x8x128xf32> to vector<8x128xf32>
    %c0_81 = arith.constant 0 : index
    %c0_82 = arith.constant 0 : index
    %c0_83 = arith.constant 0 : index
    %245 = vector.load %arg2[%c0_81, %c0_82, %c0_83] : memref<14x8x128xf32, #tpu.memory_space<vmem>>, vector<1x8x128xf32>
    %246 = vector.shape_cast %245 : vector<1x8x128xf32> to vector<8x128xf32>
    %247 = arith.subf %244, %246 : vector<8x128xf32>
    %248 = arith.mulf %247, %247 : vector<8x128xf32>
    %249 = arith.addf %242, %248 : vector<8x128xf32>
    %c2 = arith.constant 2 : index
    %c0_84 = arith.constant 0 : index
    %c0_85 = arith.constant 0 : index
    %250 = vector.load %arg3[%c2, %c0_84, %c0_85] : memref<9x8x128xf32, #tpu.memory_space<vmem>>, vector<1x8x128xf32>
    %251 = vector.shape_cast %250 : vector<1x8x128xf32> to vector<8x128xf32>
    %c1_86 = arith.constant 1 : index
    %c0_87 = arith.constant 0 : index
    %c0_88 = arith.constant 0 : index
    %252 = vector.load %arg2[%c1_86, %c0_87, %c0_88] : memref<14x8x128xf32, #tpu.memory_space<vmem>>, vector<1x8x128xf32>
    %253 = vector.shape_cast %252 : vector<1x8x128xf32> to vector<8x128xf32>
    %254 = arith.subf %251, %253 : vector<8x128xf32>
    %255 = arith.mulf %254, %254 : vector<8x128xf32>
    %256 = arith.addf %249, %255 : vector<8x128xf32>
    %c3 = arith.constant 3 : index
    %c0_89 = arith.constant 0 : index
    %c0_90 = arith.constant 0 : index
    %257 = vector.load %arg3[%c3, %c0_89, %c0_90] : memref<9x8x128xf32, #tpu.memory_space<vmem>>, vector<1x8x128xf32>
    %258 = vector.shape_cast %257 : vector<1x8x128xf32> to vector<8x128xf32>
    %c2_91 = arith.constant 2 : index
    %c0_92 = arith.constant 0 : index
    %c0_93 = arith.constant 0 : index
    %259 = vector.load %arg2[%c2_91, %c0_92, %c0_93] : memref<14x8x128xf32, #tpu.memory_space<vmem>>, vector<1x8x128xf32>
    %260 = vector.shape_cast %259 : vector<1x8x128xf32> to vector<8x128xf32>
    %261 = arith.subf %258, %260 : vector<8x128xf32>
    %262 = arith.mulf %261, %261 : vector<8x128xf32>
    %263 = arith.addf %256, %262 : vector<8x128xf32>
    %c4_94 = arith.constant 4 : index
    %c0_95 = arith.constant 0 : index
    %c0_96 = arith.constant 0 : index
    %264 = vector.load %arg3[%c4_94, %c0_95, %c0_96] : memref<9x8x128xf32, #tpu.memory_space<vmem>>, vector<1x8x128xf32>
    %265 = vector.shape_cast %264 : vector<1x8x128xf32> to vector<8x128xf32>
    %c3_97 = arith.constant 3 : index
    %c0_98 = arith.constant 0 : index
    %c0_99 = arith.constant 0 : index
    %266 = vector.load %arg2[%c3_97, %c0_98, %c0_99] : memref<14x8x128xf32, #tpu.memory_space<vmem>>, vector<1x8x128xf32>
    %267 = vector.shape_cast %266 : vector<1x8x128xf32> to vector<8x128xf32>
    %268 = arith.subf %265, %267 : vector<8x128xf32>
    %269 = arith.mulf %268, %268 : vector<8x128xf32>
    %270 = arith.addf %263, %269 : vector<8x128xf32>
    %271 = arith.mulf %31, %270 : vector<8x128xf32>
    %272 = arith.addf %221, %228 : vector<8x128xf32>
    %cst_100 = arith.constant 5.000000e+00 : f32
    %273 = vector.broadcast %cst_100 : f32 to vector<8x128xf32>
    %274 = arith.mulf %273, %272 : vector<8x128xf32>
    %275 = arith.addf %274, %232 : vector<8x128xf32>
    %276 = arith.mulf %241, %28 : vector<8x128xf32>
    %cst_101 = arith.constant 5.000000e-01 : f32
    %277 = vector.broadcast %cst_101 : f32 to vector<8x128xf32>
    %278 = arith.mulf %277, %276 : vector<8x128xf32>
    %279 = arith.addf %275, %278 : vector<8x128xf32>
    %280 = arith.addf %279, %271 : vector<8x128xf32>
    %281 = vector.shape_cast %280 : vector<8x128xf32> to vector<1x8x128xf32>
    %cst_102 = arith.constant dense<0.000000e+00> : vector<8x128xf32>
    %282 = vector.multi_reduction <add>, %281, %cst_102 [0] : vector<1x8x128xf32> to vector<8x128xf32>
    %c0_103 = arith.constant 0 : index
    %c0_104 = arith.constant 0 : index
    %283 = vector.load %arg4[%c0_103, %c0_104] : memref<8x128xf32, #tpu.memory_space<vmem>>, vector<8x128xf32>
    tpu.vector_store %arg4[%c0_103, %c0_104], %282 {strides = array<i32>} : memref<8x128xf32, #tpu.memory_space<vmem>>, vector<8x128xf32>,
    return
  }
  func.func @transform_0(%arg0: i32, %arg1: memref<1xi32, #tpu.memory_space<smem>>) -> (i32, i32, i32) {
    %c0_i32 = arith.constant 0 : i32
    %c0_i32_0 = arith.constant 0 : i32
    %c0_i32_1 = arith.constant 0 : i32
    return %c0_i32, %arg0, %c0_i32_0 : i32, i32, i32
  }
  func.func @transform_1(%arg0: i32, %arg1: memref<1xi32, #tpu.memory_space<smem>>) -> (i32, i32, i32) {
    %c0_i32 = arith.constant 0 : i32
    %c0_i32_0 = arith.constant 0 : i32
    %c0_i32_1 = arith.constant 0 : i32
    return %c0_i32, %arg0, %c0_i32_0 : i32, i32, i32
  }
  func.func @transform_2(%arg0: i32, %arg1: memref<1xi32, #tpu.memory_space<smem>>) -> (i32, i32) {
    %c0_i32 = arith.constant 0 : i32
    %c0_i32_0 = arith.constant 0 : i32
    return %arg0, %c0_i32 : i32, i32
  }
}

</mosaic_0001>

<llo_original>
// kernel: tpu_custom_call.1
$region0: #{tpu_custom_call.1}
  #allocation0 [shape = 'u32[]', space=smem, size = 0x4, offset = 0x4, fixed_abs, tag = 'smem constant byte address 0x4 - core index']
  #allocation1 [shape = 'u32[144,128]{1,0:T(1,128)}', space=vmem, size = 0x12000, scoped, tag = 'internal scratch']
  #allocation2 [shape = 's32[1]{0}', space=sflag, size = 0x4, scoped, tag = 'scoped memory for tpu_custom_call.1']
  #allocation3 [shape = 's32[1]{0:T(128)S(6)}', space=smem, size = 0x200, scoped, tag = 'prefetched SMEM operand 0']
  %s0 = inlined_call_operand.<no memory space> [shape: s32[1], index: 0, kind: input, shape index: {}]
  %s1 = inlined_call_operand.hbm [shape: f32[14,8,128], index: 1, kind: input, shape index: {}]
  %s2 = inlined_call_operand.hbm [shape: f32[9,8,128], index: 2, kind: input, shape index: {}]
  %s3 = inlined_call_operand.hbm [shape: f32[8,128], index: 3, kind: output, shape index: {}]
  %s4 = sld [smem:[#allocation0]]
  $region26: #{tpu_custom_call.1} parent=0
    _
  %s6 = ssub.s32 1, %s4
  %s7 = scalar_select 0, %s6, %s4
  %8 = sst [smem:[#allocation3]] %s0
  $region1: #{tpu_custom_call.1} parent=0
    #allocation4 [shape = 'u8[57344]{0}', space=vmem, size = 0xe000, scoped, tag = 'input window, operand 1, single buffered']
    #allocation5 [shape = 's32[1]{0}', space=sflag, size = 0x4, scoped, tag = 'scoped memory for tpu_custom_call.1']
    #allocation6 [shape = 's32[1]{0}', space=sflag, size = 0x4, scoped, tag = 'scoped memory for tpu_custom_call.1']
    #allocation7 [shape = 'u8[36864]{0}', space=vmem, size = 0x9000, scoped, tag = 'input window, operand 2, single buffered']
    #allocation8 [shape = 's32[1]{0}', space=sflag, size = 0x4, scoped, tag = 'scoped memory for tpu_custom_call.1']
    #allocation9 [shape = 'u8[4096]{0}', space=vmem, size = 0x1000, scoped, tag = 'output window, operand 0, single buffered']
    %9 = vsyncpa [#allocation5], 0
    %10 = vsyncpa [#allocation8], 0
    %11 = vsyncpa [#allocation6], 0
    // Predicated region
    $region2: #{tpu_custom_call.1} parent=1 // pred_check
      _
    $region3: #{tpu_custom_call.1} parent=1 // pred_check_branch
      %13 = sbr.rel (0) target = $region5
    $region4: #{tpu_custom_call.1} parent=1 // pred_region
      %s15 = ssub.s32 1792, 1792
      %16 = vsyncadd [#allocation5], %s15
      %s17 = sshll.u32 [#allocation4], 4
      %s18 = int_to_ptr.vmem [resolvable:$true] %s17
      %23 = dma.hbm_to_vmem [thread:$0]  %s1, 1792, %s18, [#allocation5], 128, 128, 8
    $region5: #{tpu_custom_call.1} parent=1 // pred_fallthru
      _
    // Predicated region
    $region6: #{tpu_custom_call.1} parent=1 // pred_check
      _
    $region7: #{tpu_custom_call.1} parent=1 // pred_check_branch
      %25 = sbr.rel (0) target = $region9
    $region8: #{tpu_custom_call.1} parent=1 // pred_region
      %s27 = ssub.s32 1152, 1152
      %28 = vsyncadd [#allocation8], %s27
      %s29 = sshll.u32 [#allocation7], 4
      %s30 = int_to_ptr.vmem [resolvable:$true] %s29
      %35 = dma.hbm_to_vmem [thread:$0]  %s2, 1152, %s30, [#allocation8], 128, 128, 8
    $region9: #{tpu_custom_call.1} parent=1 // pred_fallthru
      _
    // Predicated region
    $region10: #{tpu_custom_call.1} parent=1 // pred_check
      _
    $region11: #{tpu_custom_call.1} parent=1 // pred_check_branch
      %37 = sbr.rel (0) target = $region13
    $region12: #{tpu_custom_call.1} parent=1 // pred_region
      %38 = dma.done [#allocation5], 1792
    $region13: #{tpu_custom_call.1} parent=1 // pred_fallthru
      _
    // Predicated region
    $region14: #{tpu_custom_call.1} parent=1 // pred_check
      _
    $region15: #{tpu_custom_call.1} parent=1 // pred_check_branch
      %40 = sbr.rel (0) target = $region17
    $region16: #{tpu_custom_call.1} parent=1 // pred_region
      %41 = dma.done [#allocation8], 1152
    $region17: #{tpu_custom_call.1} parent=1 // pred_fallthru
      _
    %s42 = sld [smem:[#allocation3]]
    %v43 = vlaneseq
    %v44 = vshrl.u32 %v43, 7
    %v45 = vlaneseq
    %v46 = vand.u32 %v45, 127
    %v47 = vmul.u32 %v44, 128
    %v48 = vadd.s32 %v47, %v46
    %v49 = vstv %s42
    %v50 = vadd.s32 %v48, %v49
    %v51 = vcvt.s32.f32 %v50
    %v52 = vrcp.pop 49.0
    %v53 = vmul.f32 %v51, %v52
    %v54 = vfloor.f32 %v53
    %v55 = vmul.f32 %v54, 49.0
    %v56 = vsub.f32 %v51, %v55
    %v57 = vrcp.pop 7.0
    %v58 = vmul.f32 %v56, %v57
    %v59 = vfloor.f32 %v58
    %v60 = vmul.f32 %v59, 7.0
    %v61 = vsub.f32 %v56, %v60
    %s62 = smul.u32 0, 1024
    %v63 = vstv %s62
    %v64 = vadd.s32 %v63, %v48
    %vm65 = vcmp.lt.s32.totalorder %v64, 98
    %v66 = vsel %vm65, 1, 0
    %v67 = vcvt.s32.f32 %v66
    %v68 = vld [vmem:[#allocation7] sm:$0xff]
    %v69 = vmul.f32 %v68, %v67
    %s70 = scalar_lea.vmem [#allocation7], 40
    %v71 = vld [vmem:[%s70] sm:$0xff]
    %s72 = scalar_lea.vmem [#allocation7], 48
    %v73 = vld [vmem:[%s72] sm:$0xff]
    %s74 = scalar_lea.vmem [#allocation7], 56
    %v75 = vld [vmem:[%s74] sm:$0xff]
    %s76 = scalar_lea.vmem [#allocation7], 64
    %v77 = vld [vmem:[%s76] sm:$0xff]
    %v78 = vadd.f32 %v71, %v59
    %v79 = vmul.f32 %v78, 0.14285715
    %v80 = vadd.f32 %v73, %v61
    %v81 = vmul.f32 %v80, 0.14285715
    %v82 = vmul.f32 %v75, 0.5
    %v83 = vsub.f32 %v79, %v82
    %v84 = vmul.f32 %v77, 0.5
    %v85 = vsub.f32 %v81, %v84
    %v86 = vadd.f32 %v79, %v82
    %v87 = vadd.f32 %v81, %v84
    %v88 = vsub.f32 %v86, %v83
    %v89 = vsub.f32 %v87, %v85
    %v90 = vmul.f32 %v88, %v89
    %s91 = scalar_lea.vmem [#allocation4], 32
    %v92 = vld [vmem:[%s91] sm:$0xff]
    %s93 = scalar_lea.vmem [#allocation4], 40
    %v94 = vld [vmem:[%s93] sm:$0xff]
    %s95 = scalar_lea.vmem [#allocation4], 48
    %v96 = vld [vmem:[%s95] sm:$0xff]
    %s97 = scalar_lea.vmem [#allocation4], 56
    %v98 = vld [vmem:[%s97] sm:$0xff]
    %s99 = scalar_lea.vmem [#allocation4], 64
    %v100 = vld [vmem:[%s99] sm:$0xff]
    %v101 = vadd.f32 %v94, %v59
    %v102 = vmul.f32 %v101, 0.14285715
    %v103 = vadd.f32 %v96, %v61
    %v104 = vmul.f32 %v103, 0.14285715
    %v105 = vmul.f32 %v98, %v98
    %v106 = vmul.f32 %v100, %v100
    %v107 = vmul.f32 %v105, 0.5
    %v108 = vsub.f32 %v102, %v107
    %v109 = vmul.f32 %v106, 0.5
    %v110 = vsub.f32 %v104, %v109
    %v111 = vadd.f32 %v102, %v107
    %v112 = vadd.f32 %v104, %v109
    %v113 = vsub.f32 %v111, %v108
    %v114 = vsub.f32 %v112, %v110
    %v115 = vmul.f32 %v113, %v114
    %v116 = vmax.f32 %v83, %v108
    %v117 = vmax.f32 %v85, %v110
    %v118 = vmin.f32 %v86, %v111
    %v119 = vmin.f32 %v87, %v112
    %v120 = vsub.f32 %v118, %v116
    %v121 = vmax.f32 %v120, 0.0
    %v122 = vsub.f32 %v119, %v117
    %v123 = vmax.f32 %v122, 0.0
    %v124 = vmul.f32 %v121, %v123
    %v125 = vadd.f32 %v90, %v115
    %v126 = vsub.f32 %v125, %v124
    %v127 = vadd.f32 %v126, 1e-06
    %v128 = vrcp.pop %v127
    %v129 = vmul.f32 %v124, %v128
    %s130 = scalar_lea.vmem [#allocation4], 72
    %v131 = vld [vmem:[%s130] sm:$0xff]
    %s132 = scalar_lea.vmem [#allocation4], 80
    %v133 = vld [vmem:[%s132] sm:$0xff]
    %s134 = scalar_lea.vmem [#allocation4], 88
    %v135 = vld [vmem:[%s134] sm:$0xff]
    %s136 = scalar_lea.vmem [#allocation4], 96
    %v137 = vld [vmem:[%s136] sm:$0xff]
    %s138 = scalar_lea.vmem [#allocation4], 104
    %v139 = vld [vmem:[%s138] sm:$0xff]
    %v140 = vadd.f32 %v133, %v59
    %v141 = vmul.f32 %v140, 0.14285715
    %v142 = vadd.f32 %v135, %v61
    %v143 = vmul.f32 %v142, 0.14285715
    %v144 = vmul.f32 %v137, %v137
    %v145 = vmul.f32 %v139, %v139
    %v146 = vmul.f32 %v144, 0.5
    %v147 = vsub.f32 %v141, %v146
    %v148 = vmul.f32 %v145, 0.5
    %v149 = vsub.f32 %v143, %v148
    %v150 = vadd.f32 %v141, %v146
    %v151 = vadd.f32 %v143, %v148
    %v152 = vsub.f32 %v150, %v147
    %v153 = vsub.f32 %v151, %v149
    %v154 = vmul.f32 %v152, %v153
    %v155 = vmax.f32 %v83, %v147
    %v156 = vmax.f32 %v85, %v149
    %v157 = vmin.f32 %v86, %v150
    %v158 = vmin.f32 %v87, %v151
    %v159 = vsub.f32 %v157, %v155
    %v160 = vmax.f32 %v159, 0.0
    %v161 = vsub.f32 %v158, %v156
    %v162 = vmax.f32 %v161, 0.0
    %v163 = vmul.f32 %v160, %v162
    %v164 = vadd.f32 %v90, %v154
    %v165 = vsub.f32 %v164, %v163
    %v166 = vadd.f32 %v165, 1e-06
    %v167 = vrcp.pop %v166
    %v168 = vmul.f32 %v163, %v167
    %v169 = vmax.f32 %v129, %v168
    %vm170 = vcmp.ge.f32.partialorder %v129, %v169
    %vm171 = vcmp.lt.f32.partialorder 0.0, 0.5
    %vm172 = vmand %vm170, %vm171
    %v173 = vsel %vm172, 1.0, 0.0
    %v174 = vadd.f32 %v173, 0.0
    %vm175 = vcmp.ge.f32.partialorder %v168, %v169
    %vm176 = vcmp.lt.f32.partialorder %v174, 0.5
    %vm177 = vmand %vm175, %vm176
    %v178 = vsel %vm177, 1.0, 0.0
    %v179 = vmax.f32 %v75, 1e-06
    %v180 = vrsqrt.pop %v179
    %v181 = vmul.f32 %v179, %v180
    %vm182 = vcmp.eq.f32.partialorder %v179, inf
    %v183 = vsel %vm182, %v179, %v181
    %vm184 = vcmp.eq.f32.partialorder %v179, 0.0
    %v185 = vand.u32 %v179, 2147483648
    %v186 = vsel %vm184, %v185, %v183
    %v187 = vmax.f32 %v77, 1e-06
    %v188 = vrsqrt.pop %v187
    %v189 = vmul.f32 %v187, %v188
    %vm190 = vcmp.eq.f32.partialorder %v187, inf
    %v191 = vsel %vm190, %v187, %v189
    %vm192 = vcmp.eq.f32.partialorder %v187, 0.0
    %v193 = vand.u32 %v187, 2147483648
    %v194 = vsel %vm192, %v193, %v191
    %v195 = vmul.f32 %v69, %v173
    %v196 = vsub.f32 %v71, %v94
    %v197 = vmul.f32 %v196, %v196
    %v198 = vsub.f32 %v73, %v96
    %v199 = vmul.f32 %v198, %v198
    %v200 = vadd.f32 %v197, %v199
    %v201 = vmul.f32 %v195, %v200
    %v202 = vadd.f32 %v201, 0.0
    %v203 = vsub.f32 %v186, %v98
    %v204 = vmul.f32 %v203, %v203
    %v205 = vsub.f32 %v194, %v100
    %v206 = vmul.f32 %v205, %v205
    %v207 = vadd.f32 %v204, %v206
    %v208 = vmul.f32 %v195, %v207
    %v209 = vadd.f32 %v208, 0.0
    %v210 = vsub.f32 %v129, %v92
    %v211 = vmul.f32 %v210, %v210
    %v212 = vmul.f32 %v195, %v211
    %v213 = vadd.f32 %v212, 0.0
    %v214 = vsub.f32 1.0, %v69
    %v215 = vsub.f32 1.0, %v173
    %v216 = vmul.f32 %v69, %v215
    %v217 = vadd.f32 %v214, %v216
    %v218 = vmul.f32 %v92, %v92
    %v219 = vmul.f32 %v217, %v218
    %v220 = vadd.f32 %v219, 0.0
    %v221 = vmul.f32 %v69, %v178
    %v222 = vsub.f32 %v71, %v133
    %v223 = vmul.f32 %v222, %v222
    %v224 = vsub.f32 %v73, %v135
    %v225 = vmul.f32 %v224, %v224
    %v226 = vadd.f32 %v223, %v225
    %v227 = vmul.f32 %v221, %v226
    %v228 = vadd.f32 %v202, %v227
    %v229 = vsub.f32 %v186, %v137
    %v230 = vmul.f32 %v229, %v229
    %v231 = vsub.f32 %v194, %v139
    %v232 = vmul.f32 %v231, %v231
    %v233 = vadd.f32 %v230, %v232
    %v234 = vmul.f32 %v221, %v233
    %v235 = vadd.f32 %v209, %v234
    %v236 = vsub.f32 %v168, %v131
    %v237 = vmul.f32 %v236, %v236
    %v238 = vmul.f32 %v221, %v237
    %v239 = vadd.f32 %v213, %v238
    %v240 = vsub.f32 1.0, %v178
    %v241 = vmul.f32 %v69, %v240
    %v242 = vadd.f32 %v214, %v241
    %v243 = vmul.f32 %v131, %v131
    %v244 = vmul.f32 %v242, %v243
    %v245 = vadd.f32 %v220, %v244
    %s246 = scalar_lea.vmem [#allocation7], 8
    %v247 = vld [vmem:[%s246] sm:$0xff]
    %v248 = vld [vmem:[#allocation4] sm:$0xff]
    %v249 = vsub.f32 %v247, %v248
    %v250 = vmul.f32 %v249, %v249
    %v251 = vadd.f32 %v250, 0.0
    %s252 = scalar_lea.vmem [#allocation7], 16
    %v253 = vld [vmem:[%s252] sm:$0xff]
    %s254 = scalar_lea.vmem [#allocation4], 8
    %v255 = vld [vmem:[%s254] sm:$0xff]
    %v256 = vsub.f32 %v253, %v255
    %v257 = vmul.f32 %v256, %v256
    %v258 = vadd.f32 %v251, %v257
    %s259 = scalar_lea.vmem [#allocation7], 24
    %v260 = vld [vmem:[%s259] sm:$0xff]
    %s261 = scalar_lea.vmem [#allocation4], 16
    %v262 = vld [vmem:[%s261] sm:$0xff]
    %v263 = vsub.f32 %v260, %v262
    %v264 = vmul.f32 %v263, %v263
    %v265 = vadd.f32 %v258, %v264
    %s266 = scalar_lea.vmem [#allocation7], 32
    %v267 = vld [vmem:[%s266] sm:$0xff]
    %s268 = scalar_lea.vmem [#allocation4], 24
    %v269 = vld [vmem:[%s268] sm:$0xff]
    %v270 = vsub.f32 %v267, %v269
    %v271 = vmul.f32 %v270, %v270
    %v272 = vadd.f32 %v265, %v271
    %v273 = vmul.f32 %v69, %v272
    %v274 = vadd.f32 %v228, %v235
    %v275 = vmul.f32 %v274, 5.0
    %v276 = vadd.f32 %v275, %v239
    %v277 = vmul.f32 %v245, %v67
    %v278 = vmul.f32 %v277, 0.5
    %v279 = vadd.f32 %v276, %v278
    %v280 = vadd.f32 %v279, %v273
    %v281 = vadd.f32 %v280, 0.0
    %282 = vst [vmem:[#allocation9] sm:$0xff] %v281
    // Predicated region
    $region18: #{tpu_custom_call.1} parent=1 // pred_check
      _
    $region19: #{tpu_custom_call.1} parent=1 // pred_check_branch
      %284 = sbr.rel (0) target = $region21
    $region20: #{tpu_custom_call.1} parent=1 // pred_region
      %s286 = ssub.s32 128, 128
      %287 = vsyncadd [#allocation6], %s286
      %s289 = sshll.u32 [#allocation9], 4
      %s290 = int_to_ptr.vmem [resolvable:$true] %s289
      %292 = dma.vmem_to_hbm [thread:$0]  %s290, 128, %s3, [#allocation6]
    $region21: #{tpu_custom_call.1} parent=1 // pred_fallthru
      _
    // Predicated region
    $region22: #{tpu_custom_call.1} parent=1 // pred_check
      _
    $region23: #{tpu_custom_call.1} parent=1 // pred_check_branch
      %294 = sbr.rel (0) target = $region25
    $region24: #{tpu_custom_call.1} parent=1 // pred_region
      %295 = dma.done [#allocation6], 128
    $region25: #{tpu_custom_call.1} parent=1 // pred_fallthru
      _
    %296 = vsyncpa [#allocation5], 1
    %297 = vsyncpa [#allocation8], 1
    %298 = vsyncpa [#allocation6], 1

</llo_original>
